<compile_context>
chip_gen: v5e
topology: v5e:2x2
jax: 0.10.0
libtpu: 0.0.40
codegen_flags: <defaults>
</compile_context>

<pallas_src>
import functools

import jax
import jax.numpy as jnp
import numpy as np
from jax.experimental import pallas as pl
from jax.experimental.pallas import tpu as pltpu


# ----------------------------------------------------------------------------
# Fused kernel: NormLayer.norm -> predict_linear (last pred_len cols only)
#               -> EvidenceMachineKernel + sigmoid-gated fusion -> denorm.
# ----------------------------------------------------------------------------
def fused_tefn_kernel(x_ref, pin_ref, par_ref, out_ref, *, S, F):
    # x_ref   : (R, S)          channel-major rows (b*C + c), lanes = time
    # pin_ref : (R, P)          precomputed, z-scored pi (last pred_len cols)
    # par_ref : (S + 1 + 2F, P) [wp | bp | cwt | cbt], all sliced to last P cols
    # out_ref : (R, P)          channel-major output slab
    x = x_ref[...]
    pin = pin_ref[...]

    # ---- NormLayer.norm (stats over the S time steps, per (b, c) row) ------
    m = jnp.mean(x, axis=1, keepdims=True)                    # (R, 1)
    xc = x - m
    var_x = jnp.mean(xc * xc, axis=1, keepdims=True)          # unbiased=False
    inv_sd = jax.lax.rsqrt(var_x + 1e-5)                      # one EUP rsqrt
    xn = xc * inv_sd                                          # (R, S)
    sd = (var_x + 1e-5) * inv_sd                              # == sqrt(var+eps)

    # ---- predict_linear restricted to the last pred_len output columns -----
    wp = par_ref[pl.ds(0, S), :]                              # (S, P)
    bp = par_ref[pl.ds(S, 1), :]                              # (1, P)
    xp = jnp.dot(xn, wp, preferred_element_type=jnp.float32) + bp   # (R, P)

    # ---- EvidenceMachineKernel + sigmoid gate (lerp form), sum over F ------
    acc = jnp.zeros_like(pin)
    for f in range(F):  # static unroll; F = 2**e_layers is tiny
        cw = par_ref[pl.ds(S + 1 + f, 1), :]                  # (1, P)
        cb = par_ref[pl.ds(S + 1 + F + f, 1), :]              # (1, P)
        e = xp * cw + cb
        g = jax.nn.sigmoid(e + pin)
        acc = acc + pin + g * (e - pin)                       # == g*e + (1-g)*pin

    # ---- NormLayer.denorm ---------------------------------------------------
    out_ref[...] = acc * sd + m


def _pick_row_tile(rows):
    # Modest row tiles so the same design scales on v7x (64 MiB physical /
    # 32 MiB scoped VMEM default), sharded across its 2 TCs via "parallel".
    if rows <= 1024:
        return rows
    for t in (1024, 512, 256, 128, 64, 32, 16, 8):
        if rows % t == 0:
            return t
    return rows


# ----------------------------------------------------------------------------
# Param-only precompute (run once per param update, not per forward call).
# ----------------------------------------------------------------------------
def prepare_param_inputs(params, *, batch_size, seq_len, pred_len):
    B = batch_size
    T = seq_len + pred_len
    C = params["w1"].shape[0]

    # pi path: xianxing1 -> xianxing2 -> z_score_normalize (input independent).
    piny = params["pinyT"].T                                   # (P0, P1)
    p1 = piny @ params["w1"].T + params["b1c"].reshape(1, C)   # (P0, C)
    p2 = p1.T @ params["w2T"] + params["b2r"]                  # (C, B*T)
    pin_full = (p2 - p2.mean()) / jnp.std(p2, ddof=1)          # torch .std(): unbiased
    # (C, B*T) -> channel-major rows (b*C + c), lanes = time; keep last pred_len.
    pin_cm = jnp.transpose(pin_full.reshape(C, B, T), (1, 0, 2)).reshape(B * C, T)
    pin_last = pin_cm[:, seq_len:]                             # (B*C, pred_len)

    # One param slab: [wp | bp | cwt | cbt], all sliced to the last pred_len cols.
    param_slab = jnp.concatenate(
        [
            params["wp"][:, seq_len:],     # (S, P)  predict_linear W^T slice
            params["bp"][:, seq_len:],     # (1, P)  predict_linear bias slice
            params["cwt"][:, seq_len:],    # (F, P)  C_weight^T slice
            params["cbt"][:, seq_len:],    # (F, P)  C_bias^T slice
        ],
        axis=0,
    )
    return pin_last, param_slab


# ----------------------------------------------------------------------------
# Forward wrapper (one pallas_call; 3 input DMAs, 1 output).
# ----------------------------------------------------------------------------
@functools.partial(jax.jit, static_argnames=("seq_len", "pred_len"))
def model_forward(x_enc, pin, param_slab, *, seq_len, pred_len):
    B, S, C = x_enc.shape
    assert S == seq_len
    P = pred_len
    rows = B * C
    F = (param_slab.shape[0] - S - 1) // 2

    # Channel-major, lane-dense x slab (one XLA transpose outside the kernel).
    x_cm = jnp.transpose(x_enc, (0, 2, 1)).reshape(rows, S)

    row_tile = _pick_row_tile(rows)
    grid = (rows // row_tile,)

    out_cm = pl.pallas_call(
        functools.partial(fused_tefn_kernel, S=S, F=F),
        out_shape=jax.ShapeDtypeStruct((rows, P), jnp.float32),
        grid=grid,
        in_specs=[
            pl.BlockSpec((row_tile, S), lambda i: (i, 0)),
            pl.BlockSpec((row_tile, P), lambda i: (i, 0)),
            pl.BlockSpec((S + 1 + 2 * F, P), lambda i: (0, 0)),
        ],
        out_specs=pl.BlockSpec((row_tile, P), lambda i: (i, 0)),
        compiler_params=pltpu.CompilerParams(dimension_semantics=("parallel",)),
    )(x_cm, pin, param_slab)

    # TODO(synk): at realistic pred_len (96-720) pad the output lane dim to a
    # multiple of 128 for unmasked vst; negligible at the toy P used here.
    # (B*C, P) -> (B, C, P) -> (B, pred_len, C)
    return jnp.transpose(out_cm.reshape(B, C, P), (0, 2, 1))


# ----------------------------------------------------------------------------
# Plain-JAX reference (mirrors the PyTorch forward) for verification.
# ----------------------------------------------------------------------------
def reference_forward(x_enc, params, *, seq_len, pred_len):
    B, S, C = x_enc.shape
    T = seq_len + pred_len

    # NormLayer.norm
    means = x_enc.mean(axis=1, keepdims=True)
    xc = x_enc - means
    stds = jnp.sqrt(xc.var(axis=1, keepdims=True) + 1e-5)
    xn = xc / stds

    # predict_linear (applied on (B, C, S), permuted back to (B, T, C))
    xp = jnp.einsum("bsc,st->btc", xn, params["wp"]) + params["bp"].reshape(1, T, 1)

    # pi path: xianxing1 -> xianxing2 -> reshape -> z_score_normalize
    piny = params["pinyT"].T                                   # (P0, P1)
    p1 = piny @ params["w1"].T + params["b1c"].reshape(1, C)   # (P0, C)
    p2 = p1.T @ params["w2T"] + params["b2r"]                  # (C, B*T)
    pi = p2.T.reshape(B, T, C, 1)
    pin = (pi - pi.mean()) / jnp.std(pi, ddof=1)               # unbiased std

    # EvidenceMachineKernel + sigmoid gate + fusion + sum over F
    cw = params["cwt"].T                                       # (T, F)
    cb = params["cbt"].T
    e = xp[:, :, :, None] * cw[None, :, None, :] + cb[None, :, None, :]
    gate = jax.nn.sigmoid(e + pin)
    fused = gate * e + (1.0 - gate) * pin
    out = fused.sum(-1)

    out = out * stds + means                                   # NormLayer.denorm
    return out[:, -pred_len:, :]


if __name__ == "__main__":
    # Small config consistent with the module.
    B = 2            # configs.batch_size
    seq_len = 8
    pred_len = 8
    T = seq_len + pred_len
    C = 4            # configs.c_out
    e_layers = 2
    F = 2 ** e_layers
    # TODO(synk): pinyu(c_out) is not defined in the provided source; a fixed
    # synthetic random (P0, P1) matrix stands in for the piny buffer.
    P0, P1 = 16, 8

    key = jax.random.PRNGKey(0)
    ks = jax.random.split(key, 10)

    params = {
        "pinyT": jax.random.normal(ks[0], (P1, P0), jnp.float32),            # piny^T
        "w1":    jax.random.normal(ks[1], (C, P1), jnp.float32) * 0.3,       # xianxing1 W (out, in)
        "b1c":   jax.random.normal(ks[2], (C, 1), jnp.float32) * 0.1,        # xianxing1 bias (col)
        "w2T":   jax.random.normal(ks[3], (P0, B * T), jnp.float32) * 0.3,   # xianxing2 W^T (in, out)
        "b2r":   jax.random.normal(ks[4], (1, B * T), jnp.float32) * 0.1,    # xianxing2 bias (row)
        "wp":    jax.random.normal(ks[5], (seq_len, T), jnp.float32) * 0.3,  # predict_linear W^T
        "bp":    jax.random.normal(ks[6], (1, T), jnp.float32) * 0.1,        # predict_linear bias
        "cwt":   jax.random.normal(ks[7], (F, T), jnp.float32),              # C_weight^T
        "cbt":   jax.random.normal(ks[8], (F, T), jnp.float32),              # C_bias^T
    }

    x_enc = jax.random.normal(ks[9], (B, seq_len, C), jnp.float32)

    # Param-only precompute (pi path + fused param slab) -- once per param update.
    pin, param_slab = prepare_param_inputs(
        params, batch_size=B, seq_len=seq_len, pred_len=pred_len
    )
    pin = jax.block_until_ready(pin)
    param_slab = jax.block_until_ready(param_slab)

    out = model_forward(x_enc, pin, param_slab, seq_len=seq_len, pred_len=pred_len)
    out = jax.block_until_ready(out)

    ref = reference_forward(x_enc, params, seq_len=seq_len, pred_len=pred_len)
    ref = jax.block_until_ready(ref)

    assert out.shape == (B, pred_len, C), out.shape
    # Both the kernel and the reference run matmuls at the TPU default MXU
    # precision (single bf16 pass, f32 accumulate); tolerance sized for that.
    np.testing.assert_allclose(np.asarray(out), np.asarray(ref), rtol=1e-2, atol=1e-2)

    print("KERNEL_OK")
</pallas_src>

<mosaic_0001>
module attributes {stable_mosaic.version = 11 : i64} {
  func.func @fused_tefn_kernel(%arg0: i32, %arg1: memref<8x8xf32, #tpu.memory_space<vmem>>, %arg2: memref<8x8xf32, #tpu.memory_space<vmem>>, %arg3: memref<17x8xf32, #tpu.memory_space<vmem>>, %arg4: memref<8x8xf32, #tpu.memory_space<vmem>>) attributes {dimension_semantics = [#tpu.dimension_semantics<parallel>], iteration_bounds = array<i64: 1>, scalar_prefetch = 0 : i64, scratch_operands = 0 : i64, tpu.core_type = #tpu.core_type<tc>, window_params = [{transform_indices = @transform_0, window_bounds = array<i64: 8, 8>}, {transform_indices = @transform_1, window_bounds = array<i64: 8, 8>}, {pipeline_mode = #tpu.pipeline_mode<synchronous>, transform_indices = @transform_2, window_bounds = array<i64: 17, 8>}, {transform_indices = @transform_3, window_bounds = array<i64: 8, 8>}]} {
    %c0 = arith.constant 0 : index
    %c0_0 = arith.constant 0 : index
    %0 = vector.load %arg1[%c0, %c0_0] : memref<8x8xf32, #tpu.memory_space<vmem>>, vector<8x8xf32>
    %c0_1 = arith.constant 0 : index
    %c0_2 = arith.constant 0 : index
    %1 = vector.load %arg2[%c0_1, %c0_2] : memref<8x8xf32, #tpu.memory_space<vmem>>, vector<8x8xf32>
    %cst = arith.constant dense<0.000000e+00> : vector<8xf32>
    %2 = vector.multi_reduction <add>, %0, %cst [1] : vector<8x8xf32> to vector<8xf32>
    %3 = vector.shape_cast %2 : vector<8xf32> to vector<8x1xf32>
    %cst_3 = arith.constant 8.000000e+00 : f32
    %4 = vector.broadcast %cst_3 : f32 to vector<8x1xf32>
    %5 = arith.divf %3, %4 : vector<8x1xf32>
    %6 = vector.broadcast %5 : vector<8x1xf32> to vector<8x8xf32>
    %7 = arith.subf %0, %6 : vector<8x8xf32>
    %8 = arith.mulf %7, %7 : vector<8x8xf32>
    %cst_4 = arith.constant dense<0.000000e+00> : vector<8xf32>
    %9 = vector.multi_reduction <add>, %8, %cst_4 [1] : vector<8x8xf32> to vector<8xf32>
    %10 = vector.shape_cast %9 : vector<8xf32> to vector<8x1xf32>
    %cst_5 = arith.constant 8.000000e+00 : f32
    %11 = vector.broadcast %cst_5 : f32 to vector<8x1xf32>
    %12 = arith.divf %10, %11 : vector<8x1xf32>
    %cst_6 = arith.constant 9.99999974E-6 : f32
    %13 = vector.broadcast %cst_6 : f32 to vector<8x1xf32>
    %14 = arith.addf %12, %13 : vector<8x1xf32>
    %15 = math.rsqrt %14 : vector<8x1xf32>
    %16 = vector.broadcast %15 : vector<8x1xf32> to vector<8x8xf32>
    %17 = arith.mulf %7, %16 : vector<8x8xf32>
    %cst_7 = arith.constant 9.99999974E-6 : f32
    %18 = vector.broadcast %cst_7 : f32 to vector<8x1xf32>
    %19 = arith.addf %12, %18 : vector<8x1xf32>
    %20 = arith.mulf %19, %15 : vector<8x1xf32>
    %c0_8 = arith.constant 0 : index
    %c0_9 = arith.constant 0 : index
    %21 = vector.load %arg3[%c0_8, %c0_9] : memref<17x8xf32, #tpu.memory_space<vmem>>, vector<8x8xf32>
    %c8 = arith.constant 8 : index
    %c0_10 = arith.constant 0 : index
    %22 = vector.load %arg3[%c8, %c0_10] : memref<17x8xf32, #tpu.memory_space<vmem>>, vector<1x8xf32>
    %cst_11 = arith.constant dense<0.000000e+00> : vector<8x8xf32>
    %23 = tpu.matmul %17, %21, %cst_11 {dimension_numbers = #tpu.dot_dimension_numbers<[1], [0], [0], [1], [0, 0, 1, 1], [], []>} : vector<8x8xf32>, vector<8x8xf32>, vector<8x8xf32> -> vector<8x8xf32>
    %24 = vector.broadcast %22 : vector<1x8xf32> to vector<8x8xf32>
    %25 = arith.addf %23, %24 : vector<8x8xf32>
    %cst_12 = arith.constant 0.000000e+00 : f32
    %26 = vector.broadcast %cst_12 : f32 to vector<8x8xf32>
    %c9 = arith.constant 9 : index
    %c0_13 = arith.constant 0 : index
    %27 = vector.load %arg3[%c9, %c0_13] : memref<17x8xf32, #tpu.memory_space<vmem>>, vector<1x8xf32>
    %c13 = arith.constant 13 : index
    %c0_14 = arith.constant 0 : index
    %28 = vector.load %arg3[%c13, %c0_14] : memref<17x8xf32, #tpu.memory_space<vmem>>, vector<1x8xf32>
    %29 = vector.broadcast %27 : vector<1x8xf32> to vector<8x8xf32>
    %30 = arith.mulf %25, %29 : vector<8x8xf32>
    %31 = vector.broadcast %28 : vector<1x8xf32> to vector<8x8xf32>
    %32 = arith.addf %30, %31 : vector<8x8xf32>
    %33 = arith.addf %32, %1 : vector<8x8xf32>
    %34 = arith.negf %33 : vector<8x8xf32>
    %35 = math.exp %34 : vector<8x8xf32>
    %cst_15 = arith.constant 1.000000e+00 : f32
    %36 = vector.broadcast %cst_15 : f32 to vector<8x8xf32>
    %37 = arith.addf %36, %35 : vector<8x8xf32>
    %38 = arith.divf %36, %37 : vector<8x8xf32>
    %39 = arith.addf %26, %1 : vector<8x8xf32>
    %40 = arith.subf %32, %1 : vector<8x8xf32>
    %41 = arith.mulf %38, %40 : vector<8x8xf32>
    %42 = arith.addf %39, %41 : vector<8x8xf32>
    %c10 = arith.constant 10 : index
    %c0_16 = arith.constant 0 : index
    %43 = vector.load %arg3[%c10, %c0_16] : memref<17x8xf32, #tpu.memory_space<vmem>>, vector<1x8xf32>
    %c14 = arith.constant 14 : index
    %c0_17 = arith.constant 0 : index
    %44 = vector.load %arg3[%c14, %c0_17] : memref<17x8xf32, #tpu.memory_space<vmem>>, vector<1x8xf32>
    %45 = vector.broadcast %43 : vector<1x8xf32> to vector<8x8xf32>
    %46 = arith.mulf %25, %45 : vector<8x8xf32>
    %47 = vector.broadcast %44 : vector<1x8xf32> to vector<8x8xf32>
    %48 = arith.addf %46, %47 : vector<8x8xf32>
    %49 = arith.addf %48, %1 : vector<8x8xf32>
    %50 = arith.negf %49 : vector<8x8xf32>
    %51 = math.exp %50 : vector<8x8xf32>
    %cst_18 = arith.constant 1.000000e+00 : f32
    %52 = vector.broadcast %cst_18 : f32 to vector<8x8xf32>
    %53 = arith.addf %52, %51 : vector<8x8xf32>
    %54 = arith.divf %52, %53 : vector<8x8xf32>
    %55 = arith.addf %42, %1 : vector<8x8xf32>
    %56 = arith.subf %48, %1 : vector<8x8xf32>
    %57 = arith.mulf %54, %56 : vector<8x8xf32>
    %58 = arith.addf %55, %57 : vector<8x8xf32>
    %c11 = arith.constant 11 : index
    %c0_19 = arith.constant 0 : index
    %59 = vector.load %arg3[%c11, %c0_19] : memref<17x8xf32, #tpu.memory_space<vmem>>, vector<1x8xf32>
    %c15 = arith.constant 15 : index
    %c0_20 = arith.constant 0 : index
    %60 = vector.load %arg3[%c15, %c0_20] : memref<17x8xf32, #tpu.memory_space<vmem>>, vector<1x8xf32>
    %61 = vector.broadcast %59 : vector<1x8xf32> to vector<8x8xf32>
    %62 = arith.mulf %25, %61 : vector<8x8xf32>
    %63 = vector.broadcast %60 : vector<1x8xf32> to vector<8x8xf32>
    %64 = arith.addf %62, %63 : vector<8x8xf32>
    %65 = arith.addf %64, %1 : vector<8x8xf32>
    %66 = arith.negf %65 : vector<8x8xf32>
    %67 = math.exp %66 : vector<8x8xf32>
    %cst_21 = arith.constant 1.000000e+00 : f32
    %68 = vector.broadcast %cst_21 : f32 to vector<8x8xf32>
    %69 = arith.addf %68, %67 : vector<8x8xf32>
    %70 = arith.divf %68, %69 : vector<8x8xf32>
    %71 = arith.addf %58, %1 : vector<8x8xf32>
    %72 = arith.subf %64, %1 : vector<8x8xf32>
    %73 = arith.mulf %70, %72 : vector<8x8xf32>
    %74 = arith.addf %71, %73 : vector<8x8xf32>
    %c12 = arith.constant 12 : index
    %c0_22 = arith.constant 0 : index
    %75 = vector.load %arg3[%c12, %c0_22] : memref<17x8xf32, #tpu.memory_space<vmem>>, vector<1x8xf32>
    %c16 = arith.constant 16 : index
    %c0_23 = arith.constant 0 : index
    %76 = vector.load %arg3[%c16, %c0_23] : memref<17x8xf32, #tpu.memory_space<vmem>>, vector<1x8xf32>
    %77 = vector.broadcast %75 : vector<1x8xf32> to vector<8x8xf32>
    %78 = arith.mulf %25, %77 : vector<8x8xf32>
    %79 = vector.broadcast %76 : vector<1x8xf32> to vector<8x8xf32>
    %80 = arith.addf %78, %79 : vector<8x8xf32>
    %81 = arith.addf %80, %1 : vector<8x8xf32>
    %82 = arith.negf %81 : vector<8x8xf32>
    %83 = math.exp %82 : vector<8x8xf32>
    %cst_24 = arith.constant 1.000000e+00 : f32
    %84 = vector.broadcast %cst_24 : f32 to vector<8x8xf32>
    %85 = arith.addf %84, %83 : vector<8x8xf32>
    %86 = arith.divf %84, %85 : vector<8x8xf32>
    %87 = arith.addf %74, %1 : vector<8x8xf32>
    %88 = arith.subf %80, %1 : vector<8x8xf32>
    %89 = arith.mulf %86, %88 : vector<8x8xf32>
    %90 = arith.addf %87, %89 : vector<8x8xf32>
    %91 = vector.broadcast %20 : vector<8x1xf32> to vector<8x8xf32>
    %92 = arith.mulf %90, %91 : vector<8x8xf32>
    %93 = vector.broadcast %5 : vector<8x1xf32> to vector<8x8xf32>
    %94 = arith.addf %92, %93 : vector<8x8xf32>
    %c0_25 = arith.constant 0 : index
    %c0_26 = arith.constant 0 : index
    %95 = vector.load %arg4[%c0_25, %c0_26] : memref<8x8xf32, #tpu.memory_space<vmem>>, vector<8x8xf32>
    tpu.vector_store %arg4[%c0_25, %c0_26], %94 {strides = array<i32>} : memref<8x8xf32, #tpu.memory_space<vmem>>, vector<8x8xf32>,
    return
  }
  func.func @transform_0(%arg0: i32) -> (i32, i32) {
    %c0_i32 = arith.constant 0 : i32
    %c0_i32_0 = arith.constant 0 : i32
    return %arg0, %c0_i32 : i32, i32
  }
  func.func @transform_1(%arg0: i32) -> (i32, i32) {
    %c0_i32 = arith.constant 0 : i32
    %c0_i32_0 = arith.constant 0 : i32
    return %arg0, %c0_i32 : i32, i32
  }
  func.func @transform_2(%arg0: i32) -> (i32, i32) {
    %c0_i32 = arith.constant 0 : i32
    %c0_i32_0 = arith.constant 0 : i32
    %c0_i32_1 = arith.constant 0 : i32
    return %c0_i32, %c0_i32_0 : i32, i32
  }
  func.func @transform_3(%arg0: i32) -> (i32, i32) {
    %c0_i32 = arith.constant 0 : i32
    %c0_i32_0 = arith.constant 0 : i32
    return %arg0, %c0_i32 : i32, i32
  }
}

</mosaic_0001>

<llo_original>
// kernel: model_forward.1
$region0: #{model_forward.1}
  #allocation0 [shape = 'u32[]', space=smem, size = 0x4, offset = 0x4, fixed_abs, tag = 'smem constant byte address 0x4 - core index']
  #allocation1 [shape = 'u32[72,128]{1,0:T(1,128)}', space=vmem, size = 0x9000, scoped, tag = 'internal scratch']
  %s0 = inlined_call_operand.vmem [shape: f32[8,8], index: 0, kind: input, shape index: {}]
  %s1 = inlined_call_operand.vmem [shape: f32[8,8], index: 1, kind: input, shape index: {}]
  %s2 = inlined_call_operand.vmem [shape: f32[17,8], index: 2, kind: input, shape index: {}]
  %s3 = inlined_call_operand.hbm [shape: f32[8,8], index: 3, kind: output, shape index: {}]
  %s4 = sld [smem:[#allocation0]]
  $region22: #{model_forward.1} parent=0
    _
  %s6 = ssub.s32 1, %s4
  %s7 = scalar_select 0, %s6, %s4
  $region1: #{model_forward.1} parent=0
    #allocation2 [shape = 'u8[4096]{0}', space=vmem, size = 0x1000, scoped, tag = 'output window, operand 0, single buffered']
    #allocation3 [shape = 's32[1]{0}', space=sflag, size = 0x4, scoped, tag = 'scoped memory for model_forward.1']
    %8 = vsyncpa [#allocation3], 0
    // Predicated region
    $region2: #{model_forward.1} parent=1 // pred_check
      _
    $region3: #{model_forward.1} parent=1 // pred_check_branch
      %10 = sbr.rel (0) target = $region5
    $region4: #{model_forward.1} parent=1 // pred_region
      _
    $region5: #{model_forward.1} parent=1 // pred_fallthru
      _
    // Predicated region
    $region6: #{model_forward.1} parent=1 // pred_check
      _
    $region7: #{model_forward.1} parent=1 // pred_check_branch
      %12 = sbr.rel (0) target = $region9
    $region8: #{model_forward.1} parent=1 // pred_region
      _
    $region9: #{model_forward.1} parent=1 // pred_fallthru
      _
    // Predicated region
    $region10: #{model_forward.1} parent=1 // pred_check
      _
    $region11: #{model_forward.1} parent=1 // pred_check_branch
      %14 = sbr.rel (0) target = $region13
    $region12: #{model_forward.1} parent=1 // pred_region
      _
    $region13: #{model_forward.1} parent=1 // pred_fallthru
      _
    %v15 = vld [vmem:[%s0] sm:$0xff]
    %v16 = vld [vmem:[%s1] sm:$0xff]
    %vm17 = vcmask 64512
    %v18 = vsel %vm17, %v15, 0.0
    %19 = vadd.xlane.f32.xlu0 %v18
    %v20 = vpop.xlane.xlu0 %19
    %v21 = vrcp.pop 8.0
    %v22 = vmul.f32 8.0, %v21
    %v23 = vsub.f32 1.0, %v22
    %v24 = vmul.f32 %v21, %v23
    %v25 = vadd.f32 %v21, %v24
    %vm26 = vweird.f32 %v21
    %v27 = vsel %vm26, %v21, %v25
    %v28 = vmul.f32 %v20, %v27
    %v29 = vsub.f32 %v15, %v28
    %v30 = vmul.f32 %v29, %v29
    %v31 = vsel %vm17, %v30, 0.0
    %32 = vadd.xlane.f32.xlu0 %v31
    %v33 = vpop.xlane.xlu0 %32
    %v34 = vmul.f32 %v33, %v27
    %v35 = vadd.f32 %v34, 1e-05
    %v36 = vrsqrt.pop %v35
    %v37 = vmul.f32 %v36, %v35
    %v38 = vmul.f32 %v37, %v36
    %v39 = vmul.f32 0.5, %v38
    %v40 = vsub.f32 1.5, %v39
    %v41 = vmul.f32 %v36, %v40
    %vm42 = vweird.f32 %v35
    %vm43 = vweird.f32 %v36
    %vm44 = vmor %vm42, %vm43
    %v45 = vsel %vm44, %v36, %v41
    %v46 = vmul.f32 %v29, %v45
    %v47 = vmul.f32 %v35, %v45
    %v48 = vld [vmem:[%s2] sm:$0xff]
    %v49 = vld [vmem:[%s2 + $0x8] sm:$0x1]
    %v50 = vperm.slane %v49, 0
    %v52 = vsel %vm17, %v46, 0
    %54 = vmatpush.msra.mxu0 0.0
    %55 = vmatpush.msra.mxu0 0.0
    %56 = vmatpush.msra.mxu0 0.0
    %57 = vmatpush.msra.mxu0 0.0
    %58 = vmatpush.msra.mxu0 0.0
    %59 = vmatpush.msra.mxu0 0.0
    %60 = vmatpush.msra.mxu0 0.0
    %61 = vmatpush.msra.mxu0 0.0
    %62 = vmatpush.msra.mxu0 0.0
    %63 = vmatpush.msra.mxu0 0.0
    %64 = vmatpush.msra.mxu0 0.0
    %65 = vmatpush.msra.mxu0 0.0
    %66 = vmatpush.msra.mxu0 0.0
    %67 = vmatpush.msra.mxu0 0.0
    %68 = vmatpush.msra.mxu0 0.0
    %69 = vmatpush.msra.mxu0 %v48
    %70 = vmatmul.f32.gmra.mxu0 %v52
    %v71 = vpop.f32.mrf.mxu0
    %v72 = vadd.f32 %v50, %v71
    %73 = vdwg.mxu0
    %v74 = vld [vmem:[%s2 + $0x9] sm:$0x1]
    %v75 = vld [vmem:[%s2 + $0xd] sm:$0x1]
    %v76 = vperm.slane %v74, 0
    %v77 = vmul.f32 %v72, %v76
    %v78 = vperm.slane %v75, 0
    %v79 = vadd.f32 %v77, %v78
    %v80 = vadd.f32 %v79, %v16
    %v81 = vxor.u32 %v80, 2147483648
    %v82 = vmul.f32 %v81, 1.442695
    %v83 = vpow.pop %v82
    %v84 = vadd.f32 %v83, 1.0
    %v85 = vrcp.pop %v84
    %v86 = vmul.f32 %v84, %v85
    %v87 = vsub.f32 1.0, %v86
    %v88 = vmul.f32 %v85, %v87
    %v89 = vadd.f32 %v85, %v88
    %vm90 = vweird.f32 %v84
    %vm91 = vweird.f32 %v85
    %vm92 = vmor %vm90, %vm91
    %v93 = vsel %vm92, %v85, %v89
    %v94 = vand.u32 2147483647, %v84
    %vm95 = vcmp.eq.f32.partialorder %v94, 8.507059e+37
    %v96 = vand.u32 %v84, 2147483648
    %v97 = vor.u32 1.1754944e-38, %v96
    %v98 = vsel %vm95, %v97, %v93
    %v99 = vmul.f32 1.0, %v98
    %v100 = vadd.f32 %v16, 0.0
    %v101 = vsub.f32 %v79, %v16
    %v102 = vmul.f32 %v99, %v101
    %v103 = vadd.f32 %v100, %v102
    %v104 = vld [vmem:[%s2 + $0xa] sm:$0x1]
    %v105 = vld [vmem:[%s2 + $0xe] sm:$0x1]
    %v106 = vperm.slane %v104, 0
    %v107 = vmul.f32 %v72, %v106
    %v108 = vperm.slane %v105, 0
    %v109 = vadd.f32 %v107, %v108
    %v110 = vadd.f32 %v109, %v16
    %v111 = vxor.u32 %v110, 2147483648
    %v112 = vmul.f32 %v111, 1.442695
    %v113 = vpow.pop %v112
    %v114 = vadd.f32 %v113, 1.0
    %v115 = vrcp.pop %v114
    %v116 = vmul.f32 %v114, %v115
    %v117 = vsub.f32 1.0, %v116
    %v118 = vmul.f32 %v115, %v117
    %v119 = vadd.f32 %v115, %v118
    %vm120 = vweird.f32 %v114
    %vm121 = vweird.f32 %v115
    %vm122 = vmor %vm120, %vm121
    %v123 = vsel %vm122, %v115, %v119
    %v124 = vand.u32 2147483647, %v114
    %vm125 = vcmp.eq.f32.partialorder %v124, 8.507059e+37
    %v126 = vand.u32 %v114, 2147483648
    %v127 = vor.u32 1.1754944e-38, %v126
    %v128 = vsel %vm125, %v127, %v123
    %v129 = vmul.f32 1.0, %v128
    %v130 = vadd.f32 %v103, %v16
    %v131 = vsub.f32 %v109, %v16
    %v132 = vmul.f32 %v129, %v131
    %v133 = vadd.f32 %v130, %v132
    %v134 = vld [vmem:[%s2 + $0xb] sm:$0x1]
    %v135 = vld [vmem:[%s2 + $0xf] sm:$0x1]
    %v136 = vperm.slane %v134, 0
    %v137 = vmul.f32 %v72, %v136
    %v138 = vperm.slane %v135, 0
    %v139 = vadd.f32 %v137, %v138
    %v140 = vadd.f32 %v139, %v16
    %v141 = vxor.u32 %v140, 2147483648
    %v142 = vmul.f32 %v141, 1.442695
    %v143 = vpow.pop %v142
    %v144 = vadd.f32 %v143, 1.0
    %v145 = vrcp.pop %v144
    %v146 = vmul.f32 %v144, %v145
    %v147 = vsub.f32 1.0, %v146
    %v148 = vmul.f32 %v145, %v147
    %v149 = vadd.f32 %v145, %v148
    %vm150 = vweird.f32 %v144
    %vm151 = vweird.f32 %v145
    %vm152 = vmor %vm150, %vm151
    %v153 = vsel %vm152, %v145, %v149
    %v154 = vand.u32 2147483647, %v144
    %vm155 = vcmp.eq.f32.partialorder %v154, 8.507059e+37
    %v156 = vand.u32 %v144, 2147483648
    %v157 = vor.u32 1.1754944e-38, %v156
    %v158 = vsel %vm155, %v157, %v153
    %v159 = vmul.f32 1.0, %v158
    %v160 = vadd.f32 %v133, %v16
    %v161 = vsub.f32 %v139, %v16
    %v162 = vmul.f32 %v159, %v161
    %v163 = vadd.f32 %v160, %v162
    %v164 = vld [vmem:[%s2 + $0xc] sm:$0x1]
    %v165 = vld [vmem:[%s2 + $0x10] sm:$0x1]
    %v166 = vperm.slane %v164, 0
    %v167 = vmul.f32 %v72, %v166
    %v168 = vperm.slane %v165, 0
    %v169 = vadd.f32 %v167, %v168
    %v170 = vadd.f32 %v169, %v16
    %v171 = vxor.u32 %v170, 2147483648
    %v172 = vmul.f32 %v171, 1.442695
    %v173 = vpow.pop %v172
    %v174 = vadd.f32 %v173, 1.0
    %v175 = vrcp.pop %v174
    %v176 = vmul.f32 %v174, %v175
    %v177 = vsub.f32 1.0, %v176
    %v178 = vmul.f32 %v175, %v177
    %v179 = vadd.f32 %v175, %v178
    %vm180 = vweird.f32 %v174
    %vm181 = vweird.f32 %v175
    %vm182 = vmor %vm180, %vm181
    %v183 = vsel %vm182, %v175, %v179
    %v184 = vand.u32 2147483647, %v174
    %vm185 = vcmp.eq.f32.partialorder %v184, 8.507059e+37
    %v186 = vand.u32 %v174, 2147483648
    %v187 = vor.u32 1.1754944e-38, %v186
    %v188 = vsel %vm185, %v187, %v183
    %v189 = vmul.f32 1.0, %v188
    %v190 = vadd.f32 %v163, %v16
    %v191 = vsub.f32 %v169, %v16
    %v192 = vmul.f32 %v189, %v191
    %v193 = vadd.f32 %v190, %v192
    %v194 = vmul.f32 %v193, %v47
    %v195 = vadd.f32 %v194, %v28
    %196 = vst.msk [vmem:[#allocation2] sm:$0xff] %vm17, %v195
    // Predicated region
    $region14: #{model_forward.1} parent=1 // pred_check
      _
    $region15: #{model_forward.1} parent=1 // pred_check_branch
      %198 = sbr.rel (0) target = $region17
    $region16: #{model_forward.1} parent=1 // pred_region
      %200 = vsyncadd [#allocation3], 0
      %s202 = sshll.u32 [#allocation2], 4
      %s203 = int_to_ptr.vmem [resolvable:$true] %s202
      %s204 = sshll.u32 %s3, 4
      %s205 = int_to_ptr.hbm [resolvable:$true] %s204
      %207 = dma.vmem_to_hbm [thread:$0]  %s203, 128, %s205, [#allocation3]
    $region17: #{model_forward.1} parent=1 // pred_fallthru
      _
    // Predicated region
    $region18: #{model_forward.1} parent=1 // pred_check
      _
    $region19: #{model_forward.1} parent=1 // pred_check_branch
      %209 = sbr.rel (0) target = $region21
    $region20: #{model_forward.1} parent=1 // pred_region
      %211 = dma.done [#allocation3], 128
    $region21: #{model_forward.1} parent=1 // pred_fallthru
      _
    %212 = vsyncpa [#allocation3], 1

</llo_original>
